<compile_context>
chip_gen: v6e
topology: v6e:2x2x1
jax: 0.10.0
libtpu: 0.0.40
codegen_flags: <defaults>
</compile_context>

<pallas_src>
import functools

import jax
import jax.numpy as jnp
import numpy as np
from jax import lax
from jax.experimental import pallas as pl
from jax.experimental.pallas import tpu as pltpu


# ---------------------------------------------------------------------------
# Kernel 1: hoisted input projection  gates_x = x @ [Wih_f | Wih_b] + bias.
# ---------------------------------------------------------------------------
def _input_proj_kernel(x_ref, w_ref, b_ref, o_ref):
    x = x_ref[...].astype(w_ref.dtype)     # optional bf16 MXU operands
    acc = jnp.dot(x, w_ref[...], preferred_element_type=jnp.float32)
    o_ref[...] = (acc + b_ref[...]).astype(o_ref.dtype)


# ---------------------------------------------------------------------------
# Kernel 2: bidirectional LSTM recurrence, whole time axis inside the kernel.
#   gx_ref : (T, Bc, 8H)  precomputed gate pre-activations (bias folded),
#            columns = [fwd(i,f,o,g) | bwd(i,f,o,g)]
#   whh_*  : (H, 4H)      recurrent weights, same (i,f,o,g) column order
#   out_ref: (T, Bc, 2H)  [forward_h | backward_h]
# ---------------------------------------------------------------------------
def _bilstm_recurrence_kernel(gx_ref, whh_f_ref, whh_b_ref, out_ref,
                              hf_buf, hb_buf):
    T, Bc, _ = gx_ref.shape
    H, G = whh_f_ref.shape                 # G == 4H
    w_dtype = whh_f_ref.dtype

    def cell(gates, c_prev):
        # gate order (i, f, o, g): one contiguous sigmoid slab + one tanh slab.
        sig = jax.nn.sigmoid(gates[:, :3 * H])
        i_g = sig[:, 0 * H:1 * H]
        f_g = sig[:, 1 * H:2 * H]
        o_g = sig[:, 2 * H:3 * H]
        g_g = jnp.tanh(gates[:, 3 * H:])
        c = f_g * c_prev + i_g * g_g       # f32 VPU math
        h = o_g * jnp.tanh(c)
        return h, c

    def step(t, carry):
        h_f, c_f, h_b, c_b = carry
        tb = T - 1 - t

        row_f = gx_ref[t]                  # (Bc, 8H) forward gates at time t
        row_b = gx_ref[tb]                 # (Bc, 8H) backward gates at T-1-t

        gates_f = row_f[:, :G] + jnp.dot(h_f.astype(w_dtype), whh_f_ref[...],
                                         preferred_element_type=jnp.float32)
        gates_b = row_b[:, G:] + jnp.dot(h_b.astype(w_dtype), whh_b_ref[...],
                                         preferred_element_type=jnp.float32)

        h_f, c_f = cell(gates_f, c_f)
        h_b, c_b = cell(gates_b, c_b)

        hf_buf[t] = h_f                    # forward output at time t
        hb_buf[tb] = h_b                   # backward output at time T-1-t
        return (h_f, c_f, h_b, c_b)

    zeros = jnp.zeros((Bc, H), jnp.float32)
    lax.fori_loop(0, T, step, (zeros, zeros, zeros, zeros))

    # Single (T, Bc, 2H) output block: forward half / backward half.
    out_ref[:, :, 0:H] = hf_buf[...].astype(out_ref.dtype)
    out_ref[:, :, H:2 * H] = hb_buf[...].astype(out_ref.dtype)


# ---------------------------------------------------------------------------
# Wrapper: BRNNBlock.forward
# ---------------------------------------------------------------------------
def _reorder_gates(w, H):
    # PyTorch gate order (i, f, g, o) -> (i, f, o, g) along the last axis.
    return jnp.concatenate(
        [w[..., :2 * H], w[..., 3 * H:], w[..., 2 * H:3 * H]], axis=-1)


def brnn_block_forward(x, params, dropout_rate=0.0, concat_layers=False,
                       mxu_dtype=None, batch_block=128, proj_block_m=512):
    """x: (T, B, input_size) f32.  Returns (T, B, 2*hidden) (or (h, h))."""
    T, B, Din = x.shape
    H = params["whh_f"].shape[0]
    G = 4 * H

    # One-time parameter transform (would normally happen at checkpoint load):
    # permute gate columns to (i,f,o,g), fuse the two directions' input
    # projections into one (Din, 8H) matrix, fold the bias in.
    wih_f = _reorder_gates(params["wih_f"], H)
    wih_b = _reorder_gates(params["wih_b"], H)
    whh_f = _reorder_gates(params["whh_f"], H)
    whh_b = _reorder_gates(params["whh_b"], H)
    b_f = _reorder_gates(params["b_f"], H)
    b_b = _reorder_gates(params["b_b"], H)

    w_cat = jnp.concatenate([wih_f, wih_b], axis=1)        # (Din, 8H)
    bias_cat = jnp.concatenate([b_f, b_b], axis=1)         # (1, 8H)
    if mxu_dtype is not None:                              # bf16 path (v6e/v7x)
        w_cat = w_cat.astype(mxu_dtype)
        whh_f = whh_f.astype(mxu_dtype)
        whh_b = whh_b.astype(mxu_dtype)

    # ---- Stage 1: one dense (T*B, Din) @ (Din, 8H) matmul on the MXU ----
    M = T * B
    tm = M if M <= proj_block_m else proj_block_m
    x2d = x.reshape(M, Din)
    gx2d = pl.pallas_call(
        _input_proj_kernel,
        out_shape=jax.ShapeDtypeStruct((M, 2 * G), jnp.float32),
        grid_spec=pltpu.PrefetchScalarGridSpec(
            num_scalar_prefetch=0,
            grid=(pl.cdiv(M, tm),),
            in_specs=[
                pl.BlockSpec((tm, Din), lambda m: (m, 0)),
                pl.BlockSpec((Din, 2 * G), lambda m: (0, 0)),
                pl.BlockSpec((1, 2 * G), lambda m: (0, 0)),
            ],
            out_specs=pl.BlockSpec((tm, 2 * G), lambda m: (m, 0)),
        ),
        compiler_params=pltpu.CompilerParams(
            dimension_semantics=("parallel",)),
    )(x2d, w_cat, bias_cat)
    gates_x = gx2d.reshape(T, B, 2 * G)

    # ---- Stage 2: sequential recurrence; grid over independent batch chunks ----
    Bc = B if B <= batch_block else batch_block
    out = pl.pallas_call(
        _bilstm_recurrence_kernel,
        out_shape=jax.ShapeDtypeStruct((T, B, 2 * H), x.dtype),
        grid_spec=pltpu.PrefetchScalarGridSpec(
            num_scalar_prefetch=0,
            grid=(pl.cdiv(B, Bc),),
            in_specs=[
                pl.BlockSpec((T, Bc, 2 * G), lambda b: (0, b, 0)),   # gates
                pl.BlockSpec((H, G), lambda b: (0, 0)),              # W_hh fwd
                pl.BlockSpec((H, G), lambda b: (0, 0)),              # W_hh bwd
            ],
            out_specs=pl.BlockSpec((T, Bc, 2 * H), lambda b: (0, b, 0)),
            scratch_shapes=[
                pltpu.VMEM((T, Bc, H), jnp.float32),   # forward h sequence
                pltpu.VMEM((T, Bc, H), jnp.float32),   # backward h sequence
            ],
        ),
        compiler_params=pltpu.CompilerParams(
            dimension_semantics=("parallel",)),        # batch chunks (megacore)
    )(gates_x, whh_f, whh_b)

    # nn.Dropout(p=0) is the identity.
    # TODO(synk): nonzero dropout_rate in training mode would need pltpu.prng_*
    # masking inside the kernel; the module default (p=0) is exact here.
    del dropout_rate

    if concat_layers:
        return out, out
    return out


# ---------------------------------------------------------------------------
# Pure-JAX reference (lax.scan, PyTorch gate order) for validation.
# ---------------------------------------------------------------------------
def _lstm_scan(x, wih, whh, b, reverse=False):
    T, B, _ = x.shape
    H = whh.shape[0]

    def step(carry, xt):
        h_prev, c_prev = carry
        gates = xt @ wih + h_prev @ whh + b
        i = jax.nn.sigmoid(gates[:, 0 * H:1 * H])
        f = jax.nn.sigmoid(gates[:, 1 * H:2 * H])
        g = jnp.tanh(gates[:, 2 * H:3 * H])
        o = jax.nn.sigmoid(gates[:, 3 * H:4 * H])
        c = f * c_prev + i * g
        h = o * jnp.tanh(c)
        return (h, c), h

    init = (jnp.zeros((B, H), jnp.float32), jnp.zeros((B, H), jnp.float32))
    xs = x[::-1] if reverse else x
    _, hs = lax.scan(step, init, xs)
    return hs[::-1] if reverse else hs


def brnn_block_reference(x, params):
    hf = _lstm_scan(x, params["wih_f"], params["whh_f"], params["b_f"], reverse=False)
    hb = _lstm_scan(x, params["wih_b"], params["whh_b"], params["b_b"], reverse=True)
    return jnp.concatenate([hf, hb], axis=-1)


# ---------------------------------------------------------------------------
# Deterministic parameter init (PyTorch LSTM layout: gate order i,f,g,o).
# ---------------------------------------------------------------------------
def init_params(key, input_size, hidden_size):
    k = 1.0 / np.sqrt(hidden_size)
    keys = jax.random.split(key, 8)
    u = lambda kk, shape: jax.random.uniform(kk, shape, jnp.float32, -k, k)
    wih_f = u(keys[0], (input_size, 4 * hidden_size))
    whh_f = u(keys[1], (hidden_size, 4 * hidden_size))
    b_f = (u(keys[2], (4 * hidden_size,)) + u(keys[3], (4 * hidden_size,)))[None, :]
    wih_b = u(keys[4], (input_size, 4 * hidden_size))
    whh_b = u(keys[5], (hidden_size, 4 * hidden_size))
    b_b = (u(keys[6], (4 * hidden_size,)) + u(keys[7], (4 * hidden_size,)))[None, :]
    return dict(wih_f=wih_f, whh_f=whh_f, b_f=b_f,
                wih_b=wih_b, whh_b=whh_b, b_b=b_b)


if __name__ == "__main__":
    T, B, Din, H = 8, 8, 16, 32   # seq=8, batch=8, input_size=16, hidden=32

    key = jax.random.PRNGKey(0)
    kx, kp = jax.random.split(key)
    x = jax.random.normal(kx, (T, B, Din), jnp.float32)
    params = init_params(kp, Din, H)

    fwd = jax.jit(functools.partial(brnn_block_forward, dropout_rate=0.0,
                                    concat_layers=False))
    out = jax.block_until_ready(fwd(x, params))

    ref = brnn_block_reference(x, params)
    np.testing.assert_allclose(np.asarray(out), np.asarray(ref),
                               rtol=1e-4, atol=1e-4)
    assert out.shape == (T, B, 2 * H)

    print("KERNEL_OK")
</pallas_src>

<mosaic_0001>
module attributes {stable_mosaic.version = 11 : i64} {
  func.func @_input_proj_kernel(%arg0: i32, %arg1: memref<64x16xf32, #tpu.memory_space<vmem>>, %arg2: memref<16x256xf32, #tpu.memory_space<vmem>>, %arg3: memref<1x256xf32, #tpu.memory_space<vmem>>, %arg4: memref<64x256xf32, #tpu.memory_space<vmem>>) attributes {dimension_semantics = [#tpu.dimension_semantics<parallel>], iteration_bounds = array<i64: 1>, scalar_prefetch = 0 : i64, scratch_operands = 0 : i64, tpu.core_type = #tpu.core_type<tc>, window_params = [{transform_indices = @transform_0, window_bounds = array<i64: 64, 16>}, {pipeline_mode = #tpu.pipeline_mode<synchronous>, transform_indices = @transform_1, window_bounds = array<i64: 16, 256>}, {pipeline_mode = #tpu.pipeline_mode<synchronous>, transform_indices = @transform_2, window_bounds = array<i64: 1, 256>}, {transform_indices = @transform_3, window_bounds = array<i64: 64, 256>}]} {
    %c0 = arith.constant 0 : index
    %c0_0 = arith.constant 0 : index
    %0 = vector.load %arg1[%c0, %c0_0] : memref<64x16xf32, #tpu.memory_space<vmem>>, vector<64x16xf32>
    %c0_1 = arith.constant 0 : index
    %c0_2 = arith.constant 0 : index
    %1 = vector.load %arg2[%c0_1, %c0_2] : memref<16x256xf32, #tpu.memory_space<vmem>>, vector<16x256xf32>
    %cst = arith.constant dense<0.000000e+00> : vector<64x256xf32>
    %2 = tpu.matmul %0, %1, %cst {dimension_numbers = #tpu.dot_dimension_numbers<[1], [0], [0], [1], [0, 0, 1, 1], [], []>} : vector<64x16xf32>, vector<16x256xf32>, vector<64x256xf32> -> vector<64x256xf32>
    %c0_3 = arith.constant 0 : index
    %c0_4 = arith.constant 0 : index
    %3 = vector.load %arg3[%c0_3, %c0_4] : memref<1x256xf32, #tpu.memory_space<vmem>>, vector<1x256xf32>
    %4 = vector.broadcast %3 : vector<1x256xf32> to vector<64x256xf32>
    %5 = arith.addf %2, %4 : vector<64x256xf32>
    %c0_5 = arith.constant 0 : index
    %c0_6 = arith.constant 0 : index
    %6 = vector.load %arg4[%c0_5, %c0_6] : memref<64x256xf32, #tpu.memory_space<vmem>>, vector<64x256xf32>
    tpu.vector_store %arg4[%c0_5, %c0_6], %5 {strides = array<i32>} : memref<64x256xf32, #tpu.memory_space<vmem>>, vector<64x256xf32>,
    return
  }
  func.func @transform_0(%arg0: i32) -> (i32, i32) {
    %c0_i32 = arith.constant 0 : i32
    %c0_i32_0 = arith.constant 0 : i32
    return %arg0, %c0_i32 : i32, i32
  }
  func.func @transform_1(%arg0: i32) -> (i32, i32) {
    %c0_i32 = arith.constant 0 : i32
    %c0_i32_0 = arith.constant 0 : i32
    %c0_i32_1 = arith.constant 0 : i32
    return %c0_i32, %c0_i32_0 : i32, i32
  }
  func.func @transform_2(%arg0: i32) -> (i32, i32) {
    %c0_i32 = arith.constant 0 : i32
    %c0_i32_0 = arith.constant 0 : i32
    %c0_i32_1 = arith.constant 0 : i32
    return %c0_i32, %c0_i32_0 : i32, i32
  }
  func.func @transform_3(%arg0: i32) -> (i32, i32) {
    %c0_i32 = arith.constant 0 : i32
    %c0_i32_0 = arith.constant 0 : i32
    return %arg0, %c0_i32 : i32, i32
  }
}

module attributes {stable_mosaic.version = 11 : i64} {
  func.func @_bilstm_recurrence_kernel(%arg0: i32, %arg1: memref<8x8x256xf32, #tpu.memory_space<vmem>>, %arg2: memref<32x128xf32, #tpu.memory_space<vmem>>, %arg3: memref<32x128xf32, #tpu.memory_space<vmem>>, %arg4: memref<8x8x64xf32, #tpu.memory_space<vmem>>, %arg5: memref<8x8x32xf32, #tpu.memory_space<vmem>>, %arg6: memref<8x8x32xf32, #tpu.memory_space<vmem>>) attributes {dimension_semantics = [#tpu.dimension_semantics<parallel>], iteration_bounds = array<i64: 1>, scalar_prefetch = 0 : i64, scratch_operands = 2 : i64, tpu.core_type = #tpu.core_type<tc>, window_params = [{transform_indices = @transform_0, window_bounds = array<i64: 8, 8, 256>}, {pipeline_mode = #tpu.pipeline_mode<synchronous>, transform_indices = @transform_1, window_bounds = array<i64: 32, 128>}, {pipeline_mode = #tpu.pipeline_mode<synchronous>, transform_indices = @transform_2, window_bounds = array<i64: 32, 128>}, {transform_indices = @transform_3, window_bounds = array<i64: 8, 8, 64>}]} {
    %cst = arith.constant 0.000000e+00 : f32
    %0 = vector.broadcast %cst : f32 to vector<8x32xf32>
    %c0_i32 = arith.constant 0 : i32
    %c8_i32 = arith.constant 8 : i32
    %1 = arith.addi %c0_i32, %c8_i32 : i32
    %c1_i32 = arith.constant 1 : i32
    %2:4 = scf.for %arg7 = %c0_i32 to %1 step %c1_i32 iter_args(%arg8 = %0, %arg9 = %0, %arg10 = %0, %arg11 = %0) -> (vector<8x32xf32>, vector<8x32xf32>, vector<8x32xf32>, vector<8x32xf32>)  : i32 {
      %c7_i32 = arith.constant 7 : i32
      %7 = arith.subi %c7_i32, %arg7 : i32
      %8 = arith.index_cast %arg7 : i32 to index
      %c0_11 = arith.constant 0 : index
      %c0_12 = arith.constant 0 : index
      %9 = vector.load %arg1[%8, %c0_11, %c0_12] : memref<8x8x256xf32, #tpu.memory_space<vmem>>, vector<1x8x256xf32>
      %10 = vector.shape_cast %9 : vector<1x8x256xf32> to vector<8x256xf32>
      %11 = arith.index_cast %7 : i32 to index
      %c0_13 = arith.constant 0 : index
      %c0_14 = arith.constant 0 : index
      %12 = vector.load %arg1[%11, %c0_13, %c0_14] : memref<8x8x256xf32, #tpu.memory_space<vmem>>, vector<1x8x256xf32>
      %13 = vector.shape_cast %12 : vector<1x8x256xf32> to vector<8x256xf32>
      %14 = vector.extract_strided_slice %10 {offsets = [0, 0], sizes = [8, 128], strides = [1, 1]} : vector<8x256xf32> to vector<8x128xf32>
      %c0_15 = arith.constant 0 : index
      %c0_16 = arith.constant 0 : index
      %15 = vector.load %arg2[%c0_15, %c0_16] : memref<32x128xf32, #tpu.memory_space<vmem>>, vector<32x128xf32>
      %cst_17 = arith.constant dense<0.000000e+00> : vector<8x128xf32>
      %16 = tpu.matmul %arg8, %15, %cst_17 {dimension_numbers = #tpu.dot_dimension_numbers<[1], [0], [0], [1], [0, 0, 1, 1], [], []>} : vector<8x32xf32>, vector<32x128xf32>, vector<8x128xf32> -> vector<8x128xf32>
      %17 = arith.addf %14, %16 : vector<8x128xf32>
      %18 = vector.extract_strided_slice %13 {offsets = [0, 128], sizes = [8, 128], strides = [1, 1]} : vector<8x256xf32> to vector<8x128xf32>
      %c0_18 = arith.constant 0 : index
      %c0_19 = arith.constant 0 : index
      %19 = vector.load %arg3[%c0_18, %c0_19] : memref<32x128xf32, #tpu.memory_space<vmem>>, vector<32x128xf32>
      %cst_20 = arith.constant dense<0.000000e+00> : vector<8x128xf32>
      %20 = tpu.matmul %arg10, %19, %cst_20 {dimension_numbers = #tpu.dot_dimension_numbers<[1], [0], [0], [1], [0, 0, 1, 1], [], []>} : vector<8x32xf32>, vector<32x128xf32>, vector<8x128xf32> -> vector<8x128xf32>
      %21 = arith.addf %18, %20 : vector<8x128xf32>
      %22 = vector.extract_strided_slice %17 {offsets = [0, 0], sizes = [8, 96], strides = [1, 1]} : vector<8x128xf32> to vector<8x96xf32>
      %23 = arith.negf %22 : vector<8x96xf32>
      %24 = math.exp %23 : vector<8x96xf32>
      %cst_21 = arith.constant 1.000000e+00 : f32
      %25 = vector.broadcast %cst_21 : f32 to vector<8x96xf32>
      %26 = arith.addf %25, %24 : vector<8x96xf32>
      %27 = arith.divf %25, %26 : vector<8x96xf32>
      %28 = vector.extract_strided_slice %27 {offsets = [0, 0], sizes = [8, 32], strides = [1, 1]} : vector<8x96xf32> to vector<8x32xf32>
      %29 = vector.extract_strided_slice %27 {offsets = [0, 32], sizes = [8, 32], strides = [1, 1]} : vector<8x96xf32> to vector<8x32xf32>
      %30 = vector.extract_strided_slice %27 {offsets = [0, 64], sizes = [8, 32], strides = [1, 1]} : vector<8x96xf32> to vector<8x32xf32>
      %31 = vector.extract_strided_slice %17 {offsets = [0, 96], sizes = [8, 32], strides = [1, 1]} : vector<8x128xf32> to vector<8x32xf32>
      %32 = math.tanh %31 : vector<8x32xf32>
      %33 = arith.mulf %29, %arg9 : vector<8x32xf32>
      %34 = arith.mulf %28, %32 : vector<8x32xf32>
      %35 = arith.addf %33, %34 : vector<8x32xf32>
      %36 = math.tanh %35 : vector<8x32xf32>
      %37 = arith.mulf %30, %36 : vector<8x32xf32>
      %38 = vector.extract_strided_slice %21 {offsets = [0, 0], sizes = [8, 96], strides = [1, 1]} : vector<8x128xf32> to vector<8x96xf32>
      %39 = arith.negf %38 : vector<8x96xf32>
      %40 = math.exp %39 : vector<8x96xf32>
      %cst_22 = arith.constant 1.000000e+00 : f32
      %41 = vector.broadcast %cst_22 : f32 to vector<8x96xf32>
      %42 = arith.addf %41, %40 : vector<8x96xf32>
      %43 = arith.divf %41, %42 : vector<8x96xf32>
      %44 = vector.extract_strided_slice %43 {offsets = [0, 0], sizes = [8, 32], strides = [1, 1]} : vector<8x96xf32> to vector<8x32xf32>
      %45 = vector.extract_strided_slice %43 {offsets = [0, 32], sizes = [8, 32], strides = [1, 1]} : vector<8x96xf32> to vector<8x32xf32>
      %46 = vector.extract_strided_slice %43 {offsets = [0, 64], sizes = [8, 32], strides = [1, 1]} : vector<8x96xf32> to vector<8x32xf32>
      %47 = vector.extract_strided_slice %21 {offsets = [0, 96], sizes = [8, 32], strides = [1, 1]} : vector<8x128xf32> to vector<8x32xf32>
      %48 = math.tanh %47 : vector<8x32xf32>
      %49 = arith.mulf %45, %arg11 : vector<8x32xf32>
      %50 = arith.mulf %44, %48 : vector<8x32xf32>
      %51 = arith.addf %49, %50 : vector<8x32xf32>
      %52 = math.tanh %51 : vector<8x32xf32>
      %53 = arith.mulf %46, %52 : vector<8x32xf32>
      %54 = arith.index_cast %arg7 : i32 to index
      %c0_23 = arith.constant 0 : index
      %c0_24 = arith.constant 0 : index
      %55 = vector.load %arg5[%54, %c0_23, %c0_24] : memref<8x8x32xf32, #tpu.memory_space<vmem>>, vector<1x8x32xf32>
      %56 = vector.shape_cast %55 : vector<1x8x32xf32> to vector<8x32xf32>
      %57 = vector.shape_cast %37 : vector<8x32xf32> to vector<1x8x32xf32>
      tpu.vector_store %arg5[%54, %c0_23, %c0_24], %57 {strides = array<i32>} : memref<8x8x32xf32, #tpu.memory_space<vmem>>, vector<1x8x32xf32>,
      %58 = arith.index_cast %7 : i32 to index
      %c0_25 = arith.constant 0 : index
      %c0_26 = arith.constant 0 : index
      %59 = vector.load %arg6[%58, %c0_25, %c0_26] : memref<8x8x32xf32, #tpu.memory_space<vmem>>, vector<1x8x32xf32>
      %60 = vector.shape_cast %59 : vector<1x8x32xf32> to vector<8x32xf32>
      %61 = vector.shape_cast %53 : vector<8x32xf32> to vector<1x8x32xf32>
      tpu.vector_store %arg6[%58, %c0_25, %c0_26], %61 {strides = array<i32>} : memref<8x8x32xf32, #tpu.memory_space<vmem>>, vector<1x8x32xf32>,
      scf.yield %37, %35, %53, %51 : vector<8x32xf32>, vector<8x32xf32>, vector<8x32xf32>, vector<8x32xf32>
    }
    %c8_i32_0 = arith.constant 8 : i32
    %c0 = arith.constant 0 : index
    %c0_1 = arith.constant 0 : index
    %c0_2 = arith.constant 0 : index
    %3 = vector.load %arg5[%c0, %c0_1, %c0_2] : memref<8x8x32xf32, #tpu.memory_space<vmem>>, vector<8x8x32xf32>
    %c0_3 = arith.constant 0 : index
    %c0_4 = arith.constant 0 : index
    %c0_5 = arith.constant 0 : index
    %4 = vector.load %arg4[%c0_3, %c0_4, %c0_5] : memref<8x8x64xf32, #tpu.memory_space<vmem>>, vector<8x8x32xf32>
    tpu.vector_store %arg4[%c0_3, %c0_4, %c0_5], %3 {strides = array<i32>} : memref<8x8x64xf32, #tpu.memory_space<vmem>>, vector<8x8x32xf32>,
    %c0_6 = arith.constant 0 : index
    %c0_7 = arith.constant 0 : index
    %c0_8 = arith.constant 0 : index
    %5 = vector.load %arg6[%c0_6, %c0_7, %c0_8] : memref<8x8x32xf32, #tpu.memory_space<vmem>>, vector<8x8x32xf32>
    %c0_9 = arith.constant 0 : index
    %c0_10 = arith.constant 0 : index
    %c32 = arith.constant 32 : index
    %6 = vector.load %arg4[%c0_9, %c0_10, %c32] : memref<8x8x64xf32, #tpu.memory_space<vmem>>, vector<8x8x32xf32>
    tpu.vector_store %arg4[%c0_9, %c0_10, %c32], %5 {strides = array<i32>} : memref<8x8x64xf32, #tpu.memory_space<vmem>>, vector<8x8x32xf32>,
    return
  }
  func.func @transform_0(%arg0: i32) -> (i32, i32, i32) {
    %c0_i32 = arith.constant 0 : i32
    %c0_i32_0 = arith.constant 0 : i32
    %c0_i32_1 = arith.constant 0 : i32
    return %c0_i32, %arg0, %c0_i32_0 : i32, i32, i32
  }
  func.func @transform_1(%arg0: i32) -> (i32, i32) {
    %c0_i32 = arith.constant 0 : i32
    %c0_i32_0 = arith.constant 0 : i32
    %c0_i32_1 = arith.constant 0 : i32
    return %c0_i32, %c0_i32_0 : i32, i32
  }
  func.func @transform_2(%arg0: i32) -> (i32, i32) {
    %c0_i32 = arith.constant 0 : i32
    %c0_i32_0 = arith.constant 0 : i32
    %c0_i32_1 = arith.constant 0 : i32
    return %c0_i32, %c0_i32_0 : i32, i32
  }
  func.func @transform_3(%arg0: i32) -> (i32, i32, i32) {
    %c0_i32 = arith.constant 0 : i32
    %c0_i32_0 = arith.constant 0 : i32
    %c0_i32_1 = arith.constant 0 : i32
    return %c0_i32, %arg0, %c0_i32_0 : i32, i32, i32
  }
}

</mosaic_0001>

<llo_original>
// kernel: brnn_block_forward.3
$region0: #{brnn_block_forward.3}
  #allocation0 [shape = 'u32[]', space=smem, size = 0x4, offset = 0x4, fixed_abs, tag = 'smem constant byte address 0x4 - core index']
  #allocation1 [shape = 'u32[144,128]{1,0:T(1,128)}', space=vmem, size = 0x12000, scoped, tag = 'internal scratch']
  #allocation2 [shape = 'f32[8,8,32]{2,1,0:T(8,128)}', space=vmem, size = 0x8000, scoped, tag = 'scratch operand']
  #allocation3 [shape = 'f32[8,8,32]{2,1,0:T(8,128)}', space=vmem, size = 0x8000, scoped, tag = 'scratch operand']
  %s0 = inlined_call_operand.vmem [shape: f32[8,8,256], index: 0, kind: input, shape index: {}]
  %s1 = inlined_call_operand.vmem [shape: f32[32,128], index: 1, kind: input, shape index: {}]
  %s2 = inlined_call_operand.vmem [shape: f32[32,128], index: 2, kind: input, shape index: {}]
  %s3 = inlined_call_operand.hbm [shape: f32[8,8,64], index: 3, kind: output, shape index: {}]
  %s4 = sld [smem:[#allocation0]]
  $region29: #{brnn_block_forward.3} parent=0
    _
  %s6 = ssub.s32 1, %s4
  %s7 = scalar_select 0, %s6, %s4
  $region1: #{brnn_block_forward.3} parent=0
    #allocation4 [shape = 'u8[32768]{0}', space=vmem, size = 0x8000, scoped, tag = 'output window, operand 0, single buffered']
    #allocation5 [shape = 's32[1]{0}', space=sflag, size = 0x4, scoped, tag = 'scoped memory for brnn_block_forward.3']
    %8 = vsyncpa [#allocation5], 0
    // Predicated region
    $region2: #{brnn_block_forward.3} parent=1 // pred_check
      _
    $region3: #{brnn_block_forward.3} parent=1 // pred_check_branch
      %10 = sbr.rel (0) target = $region5
    $region4: #{brnn_block_forward.3} parent=1 // pred_region
      _
    $region5: #{brnn_block_forward.3} parent=1 // pred_fallthru
      _
    // Predicated region
    $region6: #{brnn_block_forward.3} parent=1 // pred_check
      _
    $region7: #{brnn_block_forward.3} parent=1 // pred_check_branch
      %12 = sbr.rel (0) target = $region9
    $region8: #{brnn_block_forward.3} parent=1 // pred_region
      _
    $region9: #{brnn_block_forward.3} parent=1 // pred_fallthru
      _
    // Predicated region
    $region10: #{brnn_block_forward.3} parent=1 // pred_check
      _
    $region11: #{brnn_block_forward.3} parent=1 // pred_check_branch
      %14 = sbr.rel (0) target = $region13
    $region12: #{brnn_block_forward.3} parent=1 // pred_region
      _
    $region13: #{brnn_block_forward.3} parent=1 // pred_fallthru
      _
    loop: start=0, step=1, limit=8
    $region14: #{brnn_block_forward.3} parent=1 // loop_pre_header
      _
    $region15: #{brnn_block_forward.3} parent=1 // loop_header
      %s16 = sphi 0, %s20
      %p17 = scmp.ge.s32.totalorder %s16, 8
      %v21 = vphi 0.0, %v218
      %v22 = vphi 0.0, %v212
      %v23 = vphi 0.0, %v242
      %v24 = vphi 0.0, %v236
    $region16: #{brnn_block_forward.3} parent=1 // loop_header_branch
      %19 = sbr.rel (%p17) target = $region20
    $region17: #{brnn_block_forward.3} parent=1 // loop_body
      %s25 = ssub.s32 7, %s16
      %s26 = smul.u32 %s16, 2
      %s27 = smul.addr %s26, 8
      %s28 = scalar_lea.vmem %s0, %s27
      %v29 = vld [vmem:[%s28] sm:$0xff]
      %s30 = smul.u32 %s25, 2
      %s31 = smul.addr %s30, 8
      %s32 = scalar_lea.vmem %s0, %s31
      %v33 = vld [vmem:[%s32 + $0x8] sm:$0xff]
      %v34 = vld [vmem:[%s1] sm:$0xff]
      %v35 = vld [vmem:[%s1 + $0x8] sm:$0xff]
      %v36 = vld [vmem:[%s1 + $0x10] sm:$0xff]
      %v37 = vld [vmem:[%s1 + $0x18] sm:$0xff]
      %39 = vrot.lane.b32.xlu0 %v21, 64
      %v40 = vpop.permute.xlu0 %39
      %vm41 = vcmask 261120
      %v42 = vsel %vm41, %v40, 0
      %44 = vmatprep.subr.mxu0 0.0
      %45 = vmatpush1.msra.mxu0 0.0
      %46 = vmatprep.subr.mxu0 0.0
      %47 = vmatpush1.msra.mxu0 0.0
      %48 = vmatprep.subr.mxu0 0.0
      %49 = vmatpush1.msra.mxu0 0.0
      %50 = vmatprep.subr.mxu0 0.0
      %51 = vmatpush1.msra.mxu0 0.0
      %52 = vmatprep.subr.mxu0 0.0
      %53 = vmatpush1.msra.mxu0 0.0
      %54 = vmatprep.subr.mxu0 0.0
      %55 = vmatpush1.msra.mxu0 0.0
      %56 = vmatprep.subr.mxu0 0.0
      %57 = vmatpush1.msra.mxu0 0.0
      %58 = vmatprep.subr.mxu0 0.0
      %59 = vmatpush1.msra.mxu0 0.0
      %60 = vmatprep.subr.mxu0 0.0
      %61 = vmatpush1.msra.mxu0 0.0
      %62 = vmatprep.subr.mxu0 0.0
      %63 = vmatpush1.msra.mxu0 0.0
      %64 = vmatprep.subr.mxu0 0.0
      %65 = vmatpush1.msra.mxu0 0.0
      %66 = vmatprep.subr.mxu0 0.0
      %67 = vmatpush1.msra.mxu0 0.0
      %68 = vmatprep.subr.mxu0 0.0
      %69 = vmatpush1.msra.mxu0 %v37
      %70 = vmatprep.subr.mxu0 0.0
      %71 = vmatpush1.msra.mxu0 %v36
      %72 = vmatprep.subr.mxu0 0.0
      %73 = vmatpush1.msra.mxu0 %v35
      %74 = vmatprep.subr.mxu0 0.0
      %75 = vmatpush1.msra.mxu0 %v34
      %76 = vmatprep.subr.mxu0 0.0
      %77 = vmatpush2.msra.mxu0 0.0
      %78 = vmatprep.subr.mxu0 0.0
      %79 = vmatpush2.msra.mxu0 0.0
      %80 = vmatprep.subr.mxu0 0.0
      %81 = vmatpush2.msra.mxu0 0.0
      %82 = vmatprep.subr.mxu0 0.0
      %83 = vmatpush2.msra.mxu0 0.0
      %84 = vmatprep.subr.mxu0 0.0
      %85 = vmatpush2.msra.mxu0 0.0
      %86 = vmatprep.subr.mxu0 0.0
      %87 = vmatpush2.msra.mxu0 0.0
      %88 = vmatprep.subr.mxu0 0.0
      %89 = vmatpush2.msra.mxu0 0.0
      %90 = vmatprep.subr.mxu0 0.0
      %91 = vmatpush2.msra.mxu0 0.0
      %92 = vmatprep.subr.mxu0 0.0
      %93 = vmatpush2.msra.mxu0 0.0
      %94 = vmatprep.subr.mxu0 0.0
      %95 = vmatpush2.msra.mxu0 0.0
      %96 = vmatprep.subr.mxu0 0.0
      %97 = vmatpush2.msra.mxu0 0.0
      %98 = vmatprep.subr.mxu0 0.0
      %99 = vmatpush2.msra.mxu0 0.0
      %100 = vmatprep.subr.mxu0 0.0
      %101 = vmatpush2.msra.mxu0 0.0
      %102 = vmatprep.subr.mxu0 0.0
      %103 = vmatpush2.msra.mxu0 0.0
      %104 = vmatprep.subr.mxu0 0.0
      %105 = vmatpush2.msra.mxu0 0.0
      %106 = vmatprep.subr.mxu0 0.0
      %107 = vmatpush2.msra.mxu0 0.0
      %108 = vmatprep.mubr.f32.mxu0 0.0
      %109 = vmatmul.mubr.f32.gmra.mxu0 %v42
      %v110 = vpop.f32.mrf.mxu0
      %v111 = vadd.f32 0.0, %v110
      %v112 = vpop.f32.mrf.mxu0
      %113 = vdwg.mxu0
      %v114 = vadd.f32 %v29, %v111
      %v115 = vld [vmem:[%s2] sm:$0xff]
      %v116 = vld [vmem:[%s2 + $0x8] sm:$0xff]
      %v117 = vld [vmem:[%s2 + $0x10] sm:$0xff]
      %v118 = vld [vmem:[%s2 + $0x18] sm:$0xff]
      %120 = vrot.lane.b32.xlu0 %v23, 64
      %v121 = vpop.permute.xlu0 %120
      %v122 = vsel %vm41, %v121, 0
      %124 = vmatprep.subr.mxu0 0.0
      %125 = vmatpush1.msra.mxu0 0.0
      %126 = vmatprep.subr.mxu0 0.0
      %127 = vmatpush1.msra.mxu0 0.0
      %128 = vmatprep.subr.mxu0 0.0
      %129 = vmatpush1.msra.mxu0 0.0
      %130 = vmatprep.subr.mxu0 0.0
      %131 = vmatpush1.msra.mxu0 0.0
      %132 = vmatprep.subr.mxu0 0.0
      %133 = vmatpush1.msra.mxu0 0.0
      %134 = vmatprep.subr.mxu0 0.0
      %135 = vmatpush1.msra.mxu0 0.0
      %136 = vmatprep.subr.mxu0 0.0
      %137 = vmatpush1.msra.mxu0 0.0
      %138 = vmatprep.subr.mxu0 0.0
      %139 = vmatpush1.msra.mxu0 0.0
      %140 = vmatprep.subr.mxu0 0.0
      %141 = vmatpush1.msra.mxu0 0.0
      %142 = vmatprep.subr.mxu0 0.0
      %143 = vmatpush1.msra.mxu0 0.0
      %144 = vmatprep.subr.mxu0 0.0
      %145 = vmatpush1.msra.mxu0 0.0
      %146 = vmatprep.subr.mxu0 0.0
      %147 = vmatpush1.msra.mxu0 0.0
      %148 = vmatprep.subr.mxu0 0.0
      %149 = vmatpush1.msra.mxu0 %v118
      %150 = vmatprep.subr.mxu0 0.0
      %151 = vmatpush1.msra.mxu0 %v117
      %152 = vmatprep.subr.mxu0 0.0
      %153 = vmatpush1.msra.mxu0 %v116
      %154 = vmatprep.subr.mxu0 0.0
      %155 = vmatpush1.msra.mxu0 %v115
      %156 = vmatprep.subr.mxu0 0.0
      %157 = vmatpush2.msra.mxu0 0.0
      %158 = vmatprep.subr.mxu0 0.0
      %159 = vmatpush2.msra.mxu0 0.0
      %160 = vmatprep.subr.mxu0 0.0
      %161 = vmatpush2.msra.mxu0 0.0
      %162 = vmatprep.subr.mxu0 0.0
      %163 = vmatpush2.msra.mxu0 0.0
      %164 = vmatprep.subr.mxu0 0.0
      %165 = vmatpush2.msra.mxu0 0.0
      %166 = vmatprep.subr.mxu0 0.0
      %167 = vmatpush2.msra.mxu0 0.0
      %168 = vmatprep.subr.mxu0 0.0
      %169 = vmatpush2.msra.mxu0 0.0
      %170 = vmatprep.subr.mxu0 0.0
      %171 = vmatpush2.msra.mxu0 0.0
      %172 = vmatprep.subr.mxu0 0.0
      %173 = vmatpush2.msra.mxu0 0.0
      %174 = vmatprep.subr.mxu0 0.0
      %175 = vmatpush2.msra.mxu0 0.0
      %176 = vmatprep.subr.mxu0 0.0
      %177 = vmatpush2.msra.mxu0 0.0
      %178 = vmatprep.subr.mxu0 0.0
      %179 = vmatpush2.msra.mxu0 0.0
      %180 = vmatprep.subr.mxu0 0.0
      %181 = vmatpush2.msra.mxu0 0.0
      %182 = vmatprep.subr.mxu0 0.0
      %183 = vmatpush2.msra.mxu0 0.0
      %184 = vmatprep.subr.mxu0 0.0
      %185 = vmatpush2.msra.mxu0 0.0
      %186 = vmatprep.subr.mxu0 0.0
      %187 = vmatpush2.msra.mxu0 0.0
      %188 = vmatprep.mubr.f32.mxu0 0.0
      %189 = vmatmul.mubr.f32.gmra.mxu0 %v122
      %v190 = vpop.f32.mrf.mxu0
      %v191 = vadd.f32 0.0, %v190
      %v192 = vpop.f32.mrf.mxu0
      %193 = vdwg.mxu0
      %v194 = vadd.f32 %v33, %v191
      %v195 = vxor.u32 %v114, 2147483648
      %v196 = vmul.f32 %v195, 1.442695
      %v197 = vpow.pop %v196
      %v198 = vadd.f32 %v197, 1.0
      %v199 = vrcp.pop %v198
      %v200 = vmul.f32 1.0, %v199
      %v201 = vtanh.pop %v114
      %v202 = vmul.f32 %v200, %v22
      %204 = vrot.lane.b32.xlu0 %v201, 32
      %v205 = vpop.permute.xlu0 %204
      %v207 = vmul.f32 %v200, %v205
      %209 = vrot.lane.b32.xlu0 %v207, 32
      %v210 = vpop.permute.xlu0 %209
      %v212 = vadd.f32 %v202, %v210
      %v213 = vtanh.pop %v212
      %215 = vrot.lane.b32.xlu0 %v213, 32
      %v216 = vpop.permute.xlu0 %215
      %v218 = vmul.f32 %v200, %v216
      %v219 = vxor.u32 %v194, 2147483648
      %v220 = vmul.f32 %v219, 1.442695
      %v221 = vpow.pop %v220
      %v222 = vadd.f32 %v221, 1.0
      %v223 = vrcp.pop %v222
      %v224 = vmul.f32 1.0, %v223
      %v225 = vtanh.pop %v194
      %v226 = vmul.f32 %v224, %v24
      %228 = vrot.lane.b32.xlu0 %v225, 32
      %v229 = vpop.permute.xlu0 %228
      %v231 = vmul.f32 %v224, %v229
      %233 = vrot.lane.b32.xlu0 %v231, 32
      %v234 = vpop.permute.xlu0 %233
      %v236 = vadd.f32 %v226, %v234
      %v237 = vtanh.pop %v236
      %239 = vrot.lane.b32.xlu0 %v237, 32
      %v240 = vpop.permute.xlu0 %239
      %v242 = vmul.f32 %v224, %v240
      %244 = vrot.lane.b32.xlu0 %v218, 64
      %v245 = vpop.permute.xlu0 %244
      %s247 = smul.u32 %s16, 8
      %s248 = scalar_lea.vmem [#allocation2], %s247
      %249 = vst.msk [vmem:[%s248] sm:$0xff] %vm41, %v245
      %251 = vrot.lane.b32.xlu0 %v242, 64
      %v252 = vpop.permute.xlu0 %251
      %s254 = smul.u32 %s25, 8
      %s255 = scalar_lea.vmem [#allocation3], %s254
      %256 = vst.msk [vmem:[%s255] sm:$0xff] %vm41, %v252
    $region18: #{brnn_block_forward.3} parent=1 // loop_footer
      %s20 = sadd.s32 1, %s16
    $region19: #{brnn_block_forward.3} parent=1 // loop_footer_branch
      %15 = sbr.rel target = $region15
    $region20: #{brnn_block_forward.3} parent=1 // loop_exit
      _
    %v257 = vld [vmem:[#allocation2] sm:$0xff]
    %v258 = vld [vmem:[#allocation2 + $0x8] sm:$0xff]
    %v259 = vld [vmem:[#allocation2 + $0x10] sm:$0xff]
    %v260 = vld [vmem:[#allocation2 + $0x18] sm:$0xff]
    %v261 = vld [vmem:[#allocation2 + $0x20] sm:$0xff]
    %v262 = vld [vmem:[#allocation2 + $0x28] sm:$0xff]
    %v263 = vld [vmem:[#allocation2 + $0x30] sm:$0xff]
    %v264 = vld [vmem:[#allocation2 + $0x38] sm:$0xff]
    %vm265 = vcmask 261120
    %266 = vst.msk [vmem:[#allocation4] sm:$0xff] %vm265, %v257
    %267 = vst.msk [vmem:[#allocation4 + $0x8] sm:$0xff] %vm265, %v258
    %268 = vst.msk [vmem:[#allocation4 + $0x10] sm:$0xff] %vm265, %v259
    %269 = vst.msk [vmem:[#allocation4 + $0x18] sm:$0xff] %vm265, %v260
    %270 = vst.msk [vmem:[#allocation4 + $0x20] sm:$0xff] %vm265, %v261
    %271 = vst.msk [vmem:[#allocation4 + $0x28] sm:$0xff] %vm265, %v262
    %272 = vst.msk [vmem:[#allocation4 + $0x30] sm:$0xff] %vm265, %v263
    %273 = vst.msk [vmem:[#allocation4 + $0x38] sm:$0xff] %vm265, %v264
    %v274 = vld [vmem:[#allocation3] sm:$0xff]
    %v275 = vld [vmem:[#allocation3 + $0x8] sm:$0xff]
    %v276 = vld [vmem:[#allocation3 + $0x10] sm:$0xff]
    %v277 = vld [vmem:[#allocation3 + $0x18] sm:$0xff]
    %v278 = vld [vmem:[#allocation3 + $0x20] sm:$0xff]
    %v279 = vld [vmem:[#allocation3 + $0x28] sm:$0xff]
    %v280 = vld [vmem:[#allocation3 + $0x30] sm:$0xff]
    %v281 = vld [vmem:[#allocation3 + $0x38] sm:$0xff]
    %290 = vrot.lane.b32.xlu0 %v274, 32
    %v291 = vpop.permute.xlu0 %290
    %292 = vrot.lane.b32.xlu0 %v275, 32
    %v293 = vpop.permute.xlu0 %292
    %294 = vrot.lane.b32.xlu0 %v276, 32
    %v295 = vpop.permute.xlu0 %294
    %296 = vrot.lane.b32.xlu0 %v277, 32
    %v297 = vpop.permute.xlu0 %296
    %298 = vrot.lane.b32.xlu0 %v278, 32
    %v299 = vpop.permute.xlu0 %298
    %300 = vrot.lane.b32.xlu0 %v279, 32
    %v301 = vpop.permute.xlu0 %300
    %302 = vrot.lane.b32.xlu0 %v280, 32
    %v303 = vpop.permute.xlu0 %302
    %304 = vrot.lane.b32.xlu0 %v281, 32
    %v305 = vpop.permute.xlu0 %304
    %vm314 = vcmask 523520
    %315 = vst.msk [vmem:[#allocation4] sm:$0xff] %vm314, %v291
    %316 = vst.msk [vmem:[#allocation4 + $0x8] sm:$0xff] %vm314, %v293
    %317 = vst.msk [vmem:[#allocation4 + $0x10] sm:$0xff] %vm314, %v295
    %318 = vst.msk [vmem:[#allocation4 + $0x18] sm:$0xff] %vm314, %v297
    %319 = vst.msk [vmem:[#allocation4 + $0x20] sm:$0xff] %vm314, %v299
    %320 = vst.msk [vmem:[#allocation4 + $0x28] sm:$0xff] %vm314, %v301
    %321 = vst.msk [vmem:[#allocation4 + $0x30] sm:$0xff] %vm314, %v303
    %322 = vst.msk [vmem:[#allocation4 + $0x38] sm:$0xff] %vm314, %v305
    // Predicated region
    $region21: #{brnn_block_forward.3} parent=1 // pred_check
      _
    $region22: #{brnn_block_forward.3} parent=1 // pred_check_branch
      %324 = sbr.rel (0) target = $region24
    $region23: #{brnn_block_forward.3} parent=1 // pred_region
      %s326 = ssub.s32 1024, 1024
      %327 = vsyncadd [#allocation5], %s326
      %s328 = sshll.u32 [#allocation4], 4
      %s329 = int_to_ptr.vmem [resolvable:$true] %s328
      %334 = dma.vmem_to_hbm [thread:$0]  %s329, 1024, %s3, [#allocation5], 128, 128, 8
    $region24: #{brnn_block_forward.3} parent=1 // pred_fallthru
      _
    // Predicated region
    $region25: #{brnn_block_forward.3} parent=1 // pred_check
      _
    $region26: #{brnn_block_forward.3} parent=1 // pred_check_branch
      %336 = sbr.rel (0) target = $region28
    $region27: #{brnn_block_forward.3} parent=1 // pred_region
      %337 = dma.done [#allocation5], 1024
    $region28: #{brnn_block_forward.3} parent=1 // pred_fallthru
      _
    %338 = vsyncpa [#allocation5], 1

// kernel: brnn_block_forward.2
$region0: #{brnn_block_forward.2}
  #allocation0 [shape = 'u32[]', space=smem, size = 0x4, offset = 0x4, fixed_abs, tag = 'smem constant byte address 0x4 - core index']
  #allocation1 [shape = 'u32[144,128]{1,0:T(1,128)}', space=vmem, size = 0x12000, scoped, tag = 'internal scratch']
  %s0 = inlined_call_operand.vmem [shape: f32[64,16], index: 0, kind: input, shape index: {}]
  %s1 = inlined_call_operand.vmem [shape: f32[16,256], index: 1, kind: input, shape index: {}]
  %s2 = inlined_call_operand.vmem [shape: f32[1,256], index: 2, kind: input, shape index: {}]
  %s3 = inlined_call_operand.vmem [shape: f32[64,256], index: 3, kind: output, shape index: {}]
  %s4 = sld [smem:[#allocation0]]
  $region22: #{brnn_block_forward.2} parent=0
    _
  %s6 = ssub.s32 1, %s4
  %s7 = scalar_select 0, %s6, %s4
  // Predicated region
  $region2: #{brnn_block_forward.2} parent=0 // pred_check
    _
  $region3: #{brnn_block_forward.2} parent=0 // pred_check_branch
    %9 = sbr.rel (0) target = $region5
  $region4: #{brnn_block_forward.2} parent=0 // pred_region
    _
  $region5: #{brnn_block_forward.2} parent=0 // pred_fallthru
    _
  // Predicated region
  $region6: #{brnn_block_forward.2} parent=0 // pred_check
    _
  $region7: #{brnn_block_forward.2} parent=0 // pred_check_branch
    %11 = sbr.rel (0) target = $region9
  $region8: #{brnn_block_forward.2} parent=0 // pred_region
    _
  $region9: #{brnn_block_forward.2} parent=0 // pred_fallthru
    _
  // Predicated region
  $region10: #{brnn_block_forward.2} parent=0 // pred_check
    _
  $region11: #{brnn_block_forward.2} parent=0 // pred_check_branch
    %13 = sbr.rel (0) target = $region13
  $region12: #{brnn_block_forward.2} parent=0 // pred_region
    _
  $region13: #{brnn_block_forward.2} parent=0 // pred_fallthru
    _
  %v14 = vld [vmem:[%s0] sm:$0xff]
  %v15 = vld [vmem:[%s0 + $0x8] sm:$0xff]
  %v16 = vld [vmem:[%s0 + $0x10] sm:$0xff]
  %v17 = vld [vmem:[%s0 + $0x18] sm:$0xff]
  %v18 = vld [vmem:[%s0 + $0x20] sm:$0xff]
  %v19 = vld [vmem:[%s0 + $0x28] sm:$0xff]
  %v20 = vld [vmem:[%s0 + $0x30] sm:$0xff]
  %v21 = vld [vmem:[%s0 + $0x38] sm:$0xff]
  %v22 = vld [vmem:[%s1] sm:$0xff]
  %v23 = vld [vmem:[%s1 + $0x8] sm:$0xff]
  %v24 = vld [vmem:[%s1 + $0x10] sm:$0xff]
  %v25 = vld [vmem:[%s1 + $0x18] sm:$0xff]
  %v26 = vld [vmem:[%s2] sm:$0x3]
  %v28 = vlaneseq
  %v29 = vshrl.u32 %v28, 7
  %v30 = vsub.s32 0, %v29
  %v31 = vrot.slane %v26, %v30
  %v32 = vlaneseq
  %v33 = vshrl.u32 %v32, 7
  %v34 = vsub.s32 1, %v33
  %v35 = vrot.slane %v26, %v34
  %vm38 = vcmask 130048
  %v40 = vsel %vm38, %v14, 0
  %v43 = vsel %vm38, %v15, 0
  %v46 = vsel %vm38, %v16, 0
  %v49 = vsel %vm38, %v17, 0
  %v52 = vsel %vm38, %v18, 0
  %v55 = vsel %vm38, %v19, 0
  %v58 = vsel %vm38, %v20, 0
  %v61 = vsel %vm38, %v21, 0
  %63 = vmatprep.subr.mxu0 0.0
  %64 = vmatpush1.msra.mxu0 0.0
  %65 = vmatprep.subr.mxu0 0.0
  %66 = vmatpush1.msra.mxu0 0.0
  %67 = vmatprep.subr.mxu0 0.0
  %68 = vmatpush1.msra.mxu0 0.0
  %69 = vmatprep.subr.mxu0 0.0
  %70 = vmatpush1.msra.mxu0 0.0
  %71 = vmatprep.subr.mxu0 0.0
  %72 = vmatpush1.msra.mxu0 0.0
  %73 = vmatprep.subr.mxu0 0.0
  %74 = vmatpush1.msra.mxu0 0.0
  %75 = vmatprep.subr.mxu0 0.0
  %76 = vmatpush1.msra.mxu0 0.0
  %77 = vmatprep.subr.mxu0 0.0
  %78 = vmatpush1.msra.mxu0 0.0
  %79 = vmatprep.subr.mxu0 0.0
  %80 = vmatpush1.msra.mxu0 0.0
  %81 = vmatprep.subr.mxu0 0.0
  %82 = vmatpush1.msra.mxu0 0.0
  %83 = vmatprep.subr.mxu0 0.0
  %84 = vmatpush1.msra.mxu0 0.0
  %85 = vmatprep.subr.mxu0 0.0
  %86 = vmatpush1.msra.mxu0 0.0
  %87 = vmatprep.subr.mxu0 0.0
  %88 = vmatpush1.msra.mxu0 0.0
  %89 = vmatprep.subr.mxu0 0.0
  %90 = vmatpush1.msra.mxu0 0.0
  %91 = vmatprep.subr.mxu0 %v25
  %92 = vmatpush1.msra.mxu0 %v24
  %93 = vmatprep.subr.mxu0 %v23
  %94 = vmatpush1.msra.mxu0 %v22
  %95 = vmatprep.subr.mxu0 0.0
  %96 = vmatpush2.msra.mxu0 0.0
  %97 = vmatprep.subr.mxu0 0.0
  %98 = vmatpush2.msra.mxu0 0.0
  %99 = vmatprep.subr.mxu0 0.0
  %100 = vmatpush2.msra.mxu0 0.0
  %101 = vmatprep.subr.mxu0 0.0
  %102 = vmatpush2.msra.mxu0 0.0
  %103 = vmatprep.subr.mxu0 0.0
  %104 = vmatpush2.msra.mxu0 0.0
  %105 = vmatprep.subr.mxu0 0.0
  %106 = vmatpush2.msra.mxu0 0.0
  %107 = vmatprep.subr.mxu0 0.0
  %108 = vmatpush2.msra.mxu0 0.0
  %109 = vmatprep.subr.mxu0 0.0
  %110 = vmatpush2.msra.mxu0 0.0
  %111 = vmatprep.subr.mxu0 0.0
  %112 = vmatpush2.msra.mxu0 0.0
  %113 = vmatprep.subr.mxu0 0.0
  %114 = vmatpush2.msra.mxu0 0.0
  %115 = vmatprep.subr.mxu0 0.0
  %116 = vmatpush2.msra.mxu0 0.0
  %117 = vmatprep.subr.mxu0 0.0
  %118 = vmatpush2.msra.mxu0 0.0
  %119 = vmatprep.subr.mxu0 0.0
  %120 = vmatpush2.msra.mxu0 0.0
  %121 = vmatprep.subr.mxu0 0.0
  %122 = vmatpush2.msra.mxu0 0.0
  %123 = vmatprep.subr.mxu0 0.0
  %124 = vmatpush2.msra.mxu0 0.0
  %125 = vmatprep.subr.mxu0 0.0
  %126 = vmatpush2.msra.mxu0 0.0
  %127 = vmatprep.mubr.f32.mxu0 0.0
  %128 = vmatmul.mubr.f32.gmra.mxu0 %v40
  %v129 = vpop.f32.mrf.mxu0
  %v130 = vadd.f32 %v31, %v129
  %v131 = vpop.f32.mrf.mxu0
  %v132 = vadd.f32 %v35, %v131
  %133 = vmatprep.mubr.f32.mxu0 0.0
  %134 = vmatmul.mubr.f32.gmra.mxu0 %v43
  %v135 = vpop.f32.mrf.mxu0
  %v136 = vadd.f32 %v31, %v135
  %v137 = vpop.f32.mrf.mxu0
  %v138 = vadd.f32 %v35, %v137
  %139 = vmatprep.mubr.f32.mxu0 0.0
  %140 = vmatmul.mubr.f32.gmra.mxu0 %v46
  %v141 = vpop.f32.mrf.mxu0
  %v142 = vadd.f32 %v31, %v141
  %v143 = vpop.f32.mrf.mxu0
  %v144 = vadd.f32 %v35, %v143
  %145 = vmatprep.mubr.f32.mxu0 0.0
  %146 = vmatmul.mubr.f32.gmra.mxu0 %v49
  %v147 = vpop.f32.mrf.mxu0
  %v148 = vadd.f32 %v31, %v147
  %v149 = vpop.f32.mrf.mxu0
  %v150 = vadd.f32 %v35, %v149
  %151 = vmatprep.mubr.f32.mxu0 0.0
  %152 = vmatmul.mubr.f32.gmra.mxu0 %v52
  %v153 = vpop.f32.mrf.mxu0
  %v154 = vadd.f32 %v31, %v153
  %v155 = vpop.f32.mrf.mxu0
  %v156 = vadd.f32 %v35, %v155
  %157 = vmatprep.mubr.f32.mxu0 0.0
  %158 = vmatmul.mubr.f32.gmra.mxu0 %v55
  %v159 = vpop.f32.mrf.mxu0
  %v160 = vadd.f32 %v31, %v159
  %v161 = vpop.f32.mrf.mxu0
  %v162 = vadd.f32 %v35, %v161
  %163 = vmatprep.mubr.f32.mxu0 0.0
  %164 = vmatmul.mubr.f32.gmra.mxu0 %v58
  %v165 = vpop.f32.mrf.mxu0
  %v166 = vadd.f32 %v31, %v165
  %v167 = vpop.f32.mrf.mxu0
  %v168 = vadd.f32 %v35, %v167
  %169 = vmatprep.mubr.f32.mxu0 0.0
  %170 = vmatmul.mubr.f32.gmra.mxu0 %v61
  %v171 = vpop.f32.mrf.mxu0
  %v172 = vadd.f32 %v31, %v171
  %v173 = vpop.f32.mrf.mxu0
  %v174 = vadd.f32 %v35, %v173
  %175 = vdwg.mxu0
  %176 = vst [vmem:[%s3] sm:$0xff] %v130
  %177 = vst [vmem:[%s3 + $0x8] sm:$0xff] %v132
  %178 = vst [vmem:[%s3 + $0x10] sm:$0xff] %v136
  %179 = vst [vmem:[%s3 + $0x18] sm:$0xff] %v138
  %180 = vst [vmem:[%s3 + $0x20] sm:$0xff] %v142
  %181 = vst [vmem:[%s3 + $0x28] sm:$0xff] %v144
  %182 = vst [vmem:[%s3 + $0x30] sm:$0xff] %v148
  %183 = vst [vmem:[%s3 + $0x38] sm:$0xff] %v150
  %184 = vst [vmem:[%s3 + $0x40] sm:$0xff] %v154
  %185 = vst [vmem:[%s3 + $0x48] sm:$0xff] %v156
  %186 = vst [vmem:[%s3 + $0x50] sm:$0xff] %v160
  %187 = vst [vmem:[%s3 + $0x58] sm:$0xff] %v162
  %188 = vst [vmem:[%s3 + $0x60] sm:$0xff] %v166
  %189 = vst [vmem:[%s3 + $0x68] sm:$0xff] %v168
  %190 = vst [vmem:[%s3 + $0x70] sm:$0xff] %v172
  %191 = vst [vmem:[%s3 + $0x78] sm:$0xff] %v174
  // Predicated region
  $region14: #{brnn_block_forward.2} parent=0 // pred_check
    _
  $region15: #{brnn_block_forward.2} parent=0 // pred_check_branch
    %193 = sbr.rel (0) target = $region17
  $region16: #{brnn_block_forward.2} parent=0 // pred_region
    _
  $region17: #{brnn_block_forward.2} parent=0 // pred_fallthru
    _
  // Predicated region
  $region18: #{brnn_block_forward.2} parent=0 // pred_check
    _
  $region19: #{brnn_block_forward.2} parent=0 // pred_check_branch
    %195 = sbr.rel (0) target = $region21
  $region20: #{brnn_block_forward.2} parent=0 // pred_region
    _
  $region21: #{brnn_block_forward.2} parent=0 // pred_fallthru
    _

</llo_original>
